<compile_context>
chip_gen: v7x
topology: tpu7x:2x2x1
jax: 0.10.0
libtpu: 0.0.40
codegen_flags: <defaults>
</compile_context>

<pallas_src>
import jax
import jax.numpy as jnp
from jax.experimental import pallas as pl
from jax.experimental.pallas import tpu as pltpu

OUT_FEATURES = 14
LANE = 128   # fused weight / MXU result lane width (full vreg lane width)
_F32 = 4     # bytes per float32


def _round_up(n, m):
    return ((n + m - 1) // m) * m


# ---------------------------------------------------------------------------
# Kernel: one MXU pass per batch tile, narrow (tb, 14) store.
# ---------------------------------------------------------------------------
def fused_linear_kernel(x_ref, w_ref, b_ref, o_ref):
    # (tb, F) @ (F, 128) + (1, 128) with f32 accumulation on the MXU.
    acc = jnp.dot(x_ref[...], w_ref[...], preferred_element_type=jnp.float32)
    acc = acc + b_ref[...]
    # Store only the 14 real output lanes: the masked vst is negligible next to
    # the HBM DMA bytes saved by the narrow output block.
    o_ref[...] = acc[:, :OUT_FEATURES]


# ---------------------------------------------------------------------------
# Parameter preparation (offline / once per checkpoint).
# ---------------------------------------------------------------------------
def fuse_params(params):
    """Fold the 4 Linear layers into a single affine map (eval-mode identity
    Dropout, no activations).  Weights are stored (in, out).  The fusion chain
    runs at HIGHEST precision so the fused weights carry no bf16 rounding.
    Returns lane-padded (F, 128) weight and (1, 128) bias."""
    hi = jax.lax.Precision.HIGHEST
    w_f = params["w1"]
    for k in ("w2", "w3", "w4"):
        w_f = jnp.dot(w_f, params[k], precision=hi)            # (F, 14)
    b_f = params["b1"]
    for wk, bk in (("w2", "b2"), ("w3", "b3"), ("w4", "b4")):
        b_f = jnp.dot(b_f, params[wk], precision=hi) + params[bk]  # (1, 14)
    pad = LANE - OUT_FEATURES
    w_f = jnp.pad(w_f, ((0, 0), (0, pad)))                     # (F, 128)
    b_f = jnp.pad(b_f, ((0, 0), (0, pad)))                     # (1, 128)
    return w_f, b_f


# ---------------------------------------------------------------------------
# Tile sizing: VMEM-aware, overhead-amortizing, >= 2 grid steps when possible.
# ---------------------------------------------------------------------------
def _vmem_capacity_bytes():
    try:
        return int(pltpu.get_tpu_info().vmem_capacity_bytes)
    except Exception:
        return 64 * 1024 * 1024   # v7x per-TC capacity (smallest current gen)


def _pick_batch_tile(B, F):
    vmem_cap = _vmem_capacity_bytes()
    # Per-step VMEM footprint:
    #   x   : 2 * tb * F   * 4   (double-buffered input tile)
    #   out : 2 * tb * 14  * 4   (double-buffered output tile)
    #   W,b : F*128*4 + 128*4    (resident across all grid steps)
    resident = F * LANE * _F32 + LANE * _F32
    per_row = 2 * F * _F32 + 2 * OUT_FEATURES * _F32
    budget = min(vmem_cap // 4, 32 * 1024 * 1024)   # leave headroom
    tb_vmem = max(8, ((budget - resident) // per_row) // 8 * 8)

    # Large tiles amortize the ~0.35us/grid-step overhead...
    tb_target = 2048
    # ...but keep >= 2 grid steps so both v7x TensorCores get work.
    tb_two_steps = max(8, _round_up((B + 1) // 2, 8))

    tb = max(8, min(tb_target, tb_vmem, tb_two_steps))

    vmem_needed = resident + per_row * tb + (1 << 20)
    vmem_limit = min(max(vmem_needed, 32 * 1024 * 1024), int(vmem_cap * 0.9))
    return tb, int(vmem_limit)


# ---------------------------------------------------------------------------
# Wrapper: batch-tiled pallas_call, ragged edge handled by Pallas (no x pad).
# ---------------------------------------------------------------------------
@jax.jit
def linear_model_forward(x, w_fused, b_fused):
    """x: (B, F) float32. w_fused: (F, 128). b_fused: (1, 128). Returns (B, 14)."""
    B, F = x.shape
    N = w_fused.shape[1]  # LANE
    tb, vmem_limit = _pick_batch_tile(B, F)
    grid = (pl.cdiv(B, tb),)

    cost = pl.CostEstimate(
        flops=2 * B * F * OUT_FEATURES,
        transcendentals=0,
        bytes_accessed=B * F * _F32 + B * OUT_FEATURES * _F32 + F * LANE * _F32,
    )

    return pl.pallas_call(
        fused_linear_kernel,
        out_shape=jax.ShapeDtypeStruct((B, OUT_FEATURES), jnp.float32),
        grid=grid,
        in_specs=[
            # x: tiled over the batch grid -> automatic double-buffering.
            pl.BlockSpec((tb, F), lambda i: (i, 0)),
            # Fused weight + bias: constant index_map -> VMEM-resident.
            pl.BlockSpec((F, N), lambda i: (0, 0)),
            pl.BlockSpec((1, N), lambda i: (0, 0)),
        ],
        # Narrow, un-padded output block (last dim 14 == full array dim).
        out_specs=pl.BlockSpec((tb, OUT_FEATURES), lambda i: (i, 0)),
        compiler_params=pltpu.CompilerParams(
            dimension_semantics=("parallel",),
            vmem_limit_bytes=vmem_limit,
        ),
        cost_estimate=cost,
    )(x, w_fused, b_fused)


# ---------------------------------------------------------------------------
# Parameter init (mimics torch.nn.Linear default U(-1/sqrt(in), 1/sqrt(in))).
# ---------------------------------------------------------------------------
def init_params(key, in_features):
    dims = [(256, in_features), (128, 256), (64, 128), (OUT_FEATURES, 64)]
    params = {}
    for idx, (out_d, in_d) in enumerate(dims, start=1):
        key, kw, kb = jax.random.split(key, 3)
        bound = 1.0 / jnp.sqrt(jnp.float32(in_d))
        w_torch = jax.random.uniform(
            kw, (out_d, in_d), jnp.float32, minval=-bound, maxval=bound
        )
        b = jax.random.uniform(
            kb, (out_d,), jnp.float32, minval=-bound, maxval=bound
        )
        params[f"w{idx}"] = jnp.transpose(w_torch)   # (in, out)
        params[f"b{idx}"] = b.reshape(1, out_d)      # (1, out)
    return params


def reference_forward(x, params):
    """Un-fused 4-layer chain, matching the PyTorch module in eval() mode."""
    h = x @ params["w1"] + params["b1"]
    h = h @ params["w2"] + params["b2"]
    h = h @ params["w3"] + params["b3"]
    return h @ params["w4"] + params["b4"]


if __name__ == "__main__":
    key = jax.random.PRNGKey(0)
    F = 32                            # X_train.shape[1] (synthetic)
    params = init_params(key, F)
    w_fused, b_fused = fuse_params(params)

    # Small, tile-aligned batch.
    key, kx = jax.random.split(key)
    x_small = jax.random.normal(kx, (8, F), jnp.float32)
    out_small = jax.block_until_ready(linear_model_forward(x_small, w_fused, b_fused))
    ref_small = reference_forward(x_small, params)
    assert out_small.shape == (8, OUT_FEATURES)
    assert jnp.allclose(out_small, ref_small, atol=2e-3, rtol=2e-3)

    # Multi-step grid with a ragged edge block (B not a multiple of the tile).
    key, kx2 = jax.random.split(key)
    x_big = jax.random.normal(kx2, (300, F), jnp.float32)
    out_big = jax.block_until_ready(linear_model_forward(x_big, w_fused, b_fused))
    ref_big = reference_forward(x_big, params)
    assert out_big.shape == (300, OUT_FEATURES)
    assert jnp.allclose(out_big, ref_big, atol=2e-3, rtol=2e-3)

    print("KERNEL_OK")
</pallas_src>

<mosaic_0001>
module attributes {stable_mosaic.version = 11 : i64} {
  func.func @fused_linear_kernel(%arg0: i32, %arg1: memref<8x32xf32, #tpu.memory_space<vmem>>, %arg2: memref<32x128xf32, #tpu.memory_space<vmem>>, %arg3: memref<1x128xf32, #tpu.memory_space<vmem>>, %arg4: memref<8x14xf32, #tpu.memory_space<vmem>>) attributes {dimension_semantics = [#tpu.dimension_semantics<parallel>], iteration_bounds = array<i64: 1>, scalar_prefetch = 0 : i64, scratch_operands = 0 : i64, tpu.core_type = #tpu.core_type<tc>, window_params = [{transform_indices = @transform_0, window_bounds = array<i64: 8, 32>}, {pipeline_mode = #tpu.pipeline_mode<synchronous>, transform_indices = @transform_1, window_bounds = array<i64: 32, 128>}, {pipeline_mode = #tpu.pipeline_mode<synchronous>, transform_indices = @transform_2, window_bounds = array<i64: 1, 128>}, {transform_indices = @transform_3, window_bounds = array<i64: 8, 14>}]} {
    %c0 = arith.constant 0 : index
    %c0_0 = arith.constant 0 : index
    %0 = vector.load %arg1[%c0, %c0_0] : memref<8x32xf32, #tpu.memory_space<vmem>>, vector<8x32xf32>
    %c0_1 = arith.constant 0 : index
    %c0_2 = arith.constant 0 : index
    %1 = vector.load %arg2[%c0_1, %c0_2] : memref<32x128xf32, #tpu.memory_space<vmem>>, vector<32x128xf32>
    %cst = arith.constant dense<0.000000e+00> : vector<8x128xf32>
    %2 = tpu.matmul %0, %1, %cst {dimension_numbers = #tpu.dot_dimension_numbers<[1], [0], [0], [1], [0, 0, 1, 1], [], []>} : vector<8x32xf32>, vector<32x128xf32>, vector<8x128xf32> -> vector<8x128xf32>
    %c0_3 = arith.constant 0 : index
    %c0_4 = arith.constant 0 : index
    %3 = vector.load %arg3[%c0_3, %c0_4] : memref<1x128xf32, #tpu.memory_space<vmem>>, vector<1x128xf32>
    %4 = vector.broadcast %3 : vector<1x128xf32> to vector<8x128xf32>
    %5 = arith.addf %2, %4 : vector<8x128xf32>
    %6 = vector.extract_strided_slice %5 {offsets = [0, 0], sizes = [8, 14], strides = [1, 1]} : vector<8x128xf32> to vector<8x14xf32>
    %c0_5 = arith.constant 0 : index
    %c0_6 = arith.constant 0 : index
    %7 = vector.load %arg4[%c0_5, %c0_6] : memref<8x14xf32, #tpu.memory_space<vmem>>, vector<8x14xf32>
    tpu.vector_store %arg4[%c0_5, %c0_6], %6 {strides = array<i32>} : memref<8x14xf32, #tpu.memory_space<vmem>>, vector<8x14xf32>,
    return
  }
  func.func @transform_0(%arg0: i32) -> (i32, i32) {
    %c0_i32 = arith.constant 0 : i32
    %c0_i32_0 = arith.constant 0 : i32
    return %arg0, %c0_i32 : i32, i32
  }
  func.func @transform_1(%arg0: i32) -> (i32, i32) {
    %c0_i32 = arith.constant 0 : i32
    %c0_i32_0 = arith.constant 0 : i32
    %c0_i32_1 = arith.constant 0 : i32
    return %c0_i32, %c0_i32_0 : i32, i32
  }
  func.func @transform_2(%arg0: i32) -> (i32, i32) {
    %c0_i32 = arith.constant 0 : i32
    %c0_i32_0 = arith.constant 0 : i32
    %c0_i32_1 = arith.constant 0 : i32
    return %c0_i32, %c0_i32_0 : i32, i32
  }
  func.func @transform_3(%arg0: i32) -> (i32, i32) {
    %c0_i32 = arith.constant 0 : i32
    %c0_i32_0 = arith.constant 0 : i32
    return %arg0, %c0_i32 : i32, i32
  }
}

</mosaic_0001>

<llo_original>
// kernel: linear_model_forward.1
$region0: #{linear_model_forward.1}
  #allocation0 [shape = 'u32[]', space=smem, size = 0x4, offset = 0x4, fixed_abs, tag = 'smem constant byte address 0x4 - core index']
  #allocation1 [shape = 'u32[144,128]{1,0:T(1,128)}', space=vmem, size = 0x12000, scoped, tag = 'internal scratch']
  %s0 = inlined_call_operand.hbm [shape: f32[8,32], index: 0, kind: input, shape index: {}]
  %s1 = inlined_call_operand.hbm [shape: f32[32,128], index: 1, kind: input, shape index: {}]
  %s2 = inlined_call_operand.vmem [shape: f32[1,128], index: 2, kind: input, shape index: {}]
  %s3 = inlined_call_operand.hbm [shape: f32[8,14], index: 3, kind: output, shape index: {}]
  %s4 = sld [smem:[#allocation0]]
  $region30: #{linear_model_forward.1} parent=0
    _
  %s6 = ssub.s32 1, %s4
  %s7 = scalar_select 0, %s6, %s4
  $region1: #{linear_model_forward.1} parent=0
    #allocation2 [shape = 'u8[4096]{0}', space=vmem, size = 0x1000, scoped, tag = 'input window, operand 0, single buffered']
    #allocation3 [shape = 's32[1]{0}', space=sflag, size = 0x4, scoped, tag = 'scoped memory for linear_model_forward.1']
    #allocation4 [shape = 's32[1]{0}', space=sflag, size = 0x4, scoped, tag = 'scoped memory for linear_model_forward.1']
    #allocation5 [shape = 'u8[16384]{0}', space=vmem, size = 0x4000, scoped, tag = 'input window, operand 1, single buffered']
    #allocation6 [shape = 's32[1]{0}', space=sflag, size = 0x4, scoped, tag = 'scoped memory for linear_model_forward.1']
    #allocation7 [shape = 'u8[4096]{0}', space=vmem, size = 0x1000, scoped, tag = 'output window, operand 0, single buffered']
    %8 = vsyncpa [#allocation3], 0
    %9 = vsyncpa [#allocation6], 0
    %10 = vsyncpa [#allocation4], 0
    // Predicated region
    $region2: #{linear_model_forward.1} parent=1 // pred_check
      _
    $region3: #{linear_model_forward.1} parent=1 // pred_check_branch
      %12 = sbr.rel (0) target = $region5
    $region4: #{linear_model_forward.1} parent=1 // pred_region
      %s14 = ssub.s32 128, 128
      %15 = vsyncadd [#allocation3], %s14
      %s17 = sshll.u32 [#allocation2], 4
      %s18 = int_to_ptr.vmem [resolvable:$true] %s17
      %20 = dma.hbm_to_vmem [thread:$0]  %s0, 128, %s18, [#allocation3]
    $region5: #{linear_model_forward.1} parent=1 // pred_fallthru
      _
    // Predicated region
    $region6: #{linear_model_forward.1} parent=1 // pred_check
      _
    $region7: #{linear_model_forward.1} parent=1 // pred_check_branch
      %22 = sbr.rel (0) target = $region9
    $region8: #{linear_model_forward.1} parent=1 // pred_region
      %s24 = ssub.s32 512, 512
      %25 = vsyncadd [#allocation6], %s24
      %s26 = sshll.u32 [#allocation5], 4
      %s27 = int_to_ptr.vmem [resolvable:$true] %s26
      %32 = dma.hbm_to_vmem [thread:$0]  %s1, 512, %s27, [#allocation6], 128, 128, 8
    $region9: #{linear_model_forward.1} parent=1 // pred_fallthru
      _
    // Predicated region
    $region10: #{linear_model_forward.1} parent=1 // pred_check
      _
    $region11: #{linear_model_forward.1} parent=1 // pred_check_branch
      %34 = sbr.rel (0) target = $region13
    $region12: #{linear_model_forward.1} parent=1 // pred_region
      _
    $region13: #{linear_model_forward.1} parent=1 // pred_fallthru
      _
    // Predicated region
    $region14: #{linear_model_forward.1} parent=1 // pred_check
      _
    $region15: #{linear_model_forward.1} parent=1 // pred_check_branch
      %36 = sbr.rel (0) target = $region17
    $region16: #{linear_model_forward.1} parent=1 // pred_region
      %37 = dma.done [#allocation3], 128
    $region17: #{linear_model_forward.1} parent=1 // pred_fallthru
      _
    // Predicated region
    $region18: #{linear_model_forward.1} parent=1 // pred_check
      _
    $region19: #{linear_model_forward.1} parent=1 // pred_check_branch
      %39 = sbr.rel (0) target = $region21
    $region20: #{linear_model_forward.1} parent=1 // pred_region
      %40 = dma.done [#allocation6], 512
    $region21: #{linear_model_forward.1} parent=1 // pred_fallthru
      _
    %v41 = vld [vmem:[#allocation2] sm:$0xff]
    %v42 = vld [vmem:[#allocation5] sm:$0xff]
    %v43 = vld [vmem:[#allocation5 + $0x8] sm:$0xff]
    %v44 = vld [vmem:[#allocation5 + $0x10] sm:$0xff]
    %v45 = vld [vmem:[#allocation5 + $0x18] sm:$0xff]
    %v46 = vld [vmem:[%s2] sm:$0x1]
    %v48 = vlaneseq
    %v49 = vshrl.u32 %v48, 7
    %v50 = vsub.s32 0, %v49
    %v51 = vrot.slane %v46, %v50
    %vm53 = vcmask 261120
    %v55 = vsel %vm53, %v41, 0
    %57 = vmatprep.subr.mxu0 0.0
    %58 = vmatpush1.msra.mxu0 %v42
    %59 = vmatprep.subr.mxu0 0.0
    %60 = vmatpush1.msra.mxu0 %v43
    %61 = vmatprep.subr.mxu0 0.0
    %62 = vmatpush1.msra.mxu0 %v44
    %63 = vmatprep.subr.mxu0 0.0
    %64 = vmatpush1.msra.mxu0 %v45
    %65 = vmatprep.subr.mxu0 0.0
    %66 = vmatpush1.msra.mxu0 0.0
    %67 = vmatprep.subr.mxu0 0.0
    %68 = vmatpush1.msra.mxu0 0.0
    %69 = vmatprep.subr.mxu0 0.0
    %70 = vmatpush1.msra.mxu0 0.0
    %71 = vmatprep.subr.mxu0 0.0
    %72 = vmatpush1.msra.mxu0 0.0
    %73 = vmatprep.subr.mxu0 0.0
    %74 = vmatpush1.msra.mxu0 0.0
    %75 = vmatprep.subr.mxu0 0.0
    %76 = vmatpush1.msra.mxu0 0.0
    %77 = vmatprep.subr.mxu0 0.0
    %78 = vmatpush1.msra.mxu0 0.0
    %79 = vmatprep.subr.mxu0 0.0
    %80 = vmatpush1.msra.mxu0 0.0
    %81 = vmatprep.subr.mxu0 0.0
    %82 = vmatpush1.msra.mxu0 0.0
    %83 = vmatprep.subr.mxu0 0.0
    %84 = vmatpush1.msra.mxu0 0.0
    %85 = vmatprep.subr.mxu0 0.0
    %86 = vmatpush1.msra.mxu0 0.0
    %87 = vmatprep.subr.mxu0 0.0
    %88 = vmatpush1.msra.mxu0 0.0
    %89 = vmatprep.subr.mxu0 0.0
    %90 = vmatpush1.msra.mxu0 0.0
    %91 = vmatprep.subr.mxu0 0.0
    %92 = vmatpush1.msra.mxu0 0.0
    %93 = vmatprep.subr.mxu0 0.0
    %94 = vmatpush1.msra.mxu0 0.0
    %95 = vmatprep.subr.mxu0 0.0
    %96 = vmatpush1.msra.mxu0 0.0
    %97 = vmatprep.subr.mxu0 0.0
    %98 = vmatpush1.msra.mxu0 0.0
    %99 = vmatprep.subr.mxu0 0.0
    %100 = vmatpush1.msra.mxu0 0.0
    %101 = vmatprep.subr.mxu0 0.0
    %102 = vmatpush1.msra.mxu0 0.0
    %103 = vmatprep.subr.mxu0 0.0
    %104 = vmatpush1.msra.mxu0 0.0
    %105 = vmatprep.subr.mxu0 0.0
    %106 = vmatpush1.msra.mxu0 0.0
    %107 = vmatprep.subr.mxu0 0.0
    %108 = vmatpush1.msra.mxu0 0.0
    %109 = vmatprep.subr.mxu0 0.0
    %110 = vmatpush1.msra.mxu0 0.0
    %111 = vmatprep.subr.mxu0 0.0
    %112 = vmatpush1.msra.mxu0 0.0
    %113 = vmatprep.subr.mxu0 0.0
    %114 = vmatpush1.msra.mxu0 0.0
    %115 = vmatprep.subr.mxu0 0.0
    %116 = vmatpush1.msra.mxu0 0.0
    %117 = vmatprep.subr.mxu0 0.0
    %118 = vmatpush1.msra.mxu0 0.0
    %119 = vmatprep.subr.mxu0 0.0
    %120 = vmatpush1.msra.mxu0 0.0
    %121 = vmatprep.mubr.f32.mxu0 0.0
    %122 = vmatmul.mubr.f32.gmra.mrb[0].mxu0 %v55
    %v123 = vpop.f32.mrb[0].mxu0
    %v124 = vadd.f32 %v51, %v123
    %v125 = vpop.f32.mrb[0].mxu0
    %126 = vdwg.mxu0
    %vm127 = vcmask 113664
    %128 = vst.msk [vmem:[#allocation7] sm:$0xff] %vm127, %v124
    // Predicated region
    $region22: #{linear_model_forward.1} parent=1 // pred_check
      _
    $region23: #{linear_model_forward.1} parent=1 // pred_check_branch
      %130 = sbr.rel (0) target = $region25
    $region24: #{linear_model_forward.1} parent=1 // pred_region
      %s132 = ssub.s32 128, 128
      %133 = vsyncadd [#allocation4], %s132
      %s135 = sshll.u32 [#allocation7], 4
      %s136 = int_to_ptr.vmem [resolvable:$true] %s135
      %138 = dma.vmem_to_hbm [thread:$0]  %s136, 128, %s3, [#allocation4]
    $region25: #{linear_model_forward.1} parent=1 // pred_fallthru
      _
    // Predicated region
    $region26: #{linear_model_forward.1} parent=1 // pred_check
      _
    $region27: #{linear_model_forward.1} parent=1 // pred_check_branch
      %140 = sbr.rel (0) target = $region29
    $region28: #{linear_model_forward.1} parent=1 // pred_region
      %141 = dma.done [#allocation4], 128
    $region29: #{linear_model_forward.1} parent=1 // pred_fallthru
      _
    %142 = vsyncpa [#allocation3], 1
    %143 = vsyncpa [#allocation6], 1
    %144 = vsyncpa [#allocation4], 1

</llo_original>
